<compile_context>
chip_gen: v7x
topology: tpu7x:2x2x1
jax: 0.10.0
libtpu: 0.0.40
codegen_flags: <defaults>
</compile_context>

<pallas_src>
import jax
import jax.numpy as jnp
import numpy as np
from jax import lax
from jax.experimental import pallas as pl
from jax.experimental.pallas import tpu as pltpu


_VMEM_BUDGET_BYTES = 40 * (1 << 20)   # conservative: fits v7x's 64 MiB VMEM with headroom


def _num_tensorcores():
    """Best-effort TensorCore count per chip (v5e/v6e: 1, v7x: 2).

    Falls back to 1, which is the right (single grid step) choice for the
    single-core generations anyway."""
    try:
        info = pltpu.get_tpu_info()
        for name in ("num_cores", "num_tensorcores", "tensorcores_per_chip",
                     "num_cores_per_chip", "cores_per_chip"):
            v = getattr(info, name, None)
            if v is None:
                continue
            try:
                v = int(v)
            except Exception:
                continue
            if v > 0:
                return max(1, min(v, 2))
    except Exception:
        pass
    try:
        kind = jax.devices()[0].device_kind.lower()
        if "v7" in kind:
            return 2
    except Exception:
        pass
    return 1


def _divisors_desc(n):
    return [d for d in range(n, 0, -1) if n % d == 0]


# --------------------------------------------------------------------------
# Fused kernel: n_layers x (causal conv + ReLU) + 2x reduction + final ReLU.
# --------------------------------------------------------------------------
def _make_fused_block_kernel(*, n_layers, kernel_size, dilations, pads, margin,
                             c_in0, c_filt, c_red, lane_width, reduction_strat,
                             compute_dtype, has_mask):
    """All activations live in one VMEM slab of layout
    (channels, margin + batch_tile*(pad + L)): the batch tile is folded into
    the lane axis, so every tap is one lane-dense MXU matmul and every store
    is a full-width vector store."""
    K = kernel_size
    M = margin                     # left margin inside every source ref
    W = lane_width                 # folded (batch x time) lane width
    has_conv_reduce = reduction_strat == "conv"

    def kernel(*refs):
        idx = 0
        x_ref = refs[idx]; idx += 1
        w_ref = b_ref = mask_ref = None
        if n_layers > 0:
            w_ref = refs[idx]; idx += 1
            b_ref = refs[idx]; idx += 1
            if has_mask:
                mask_ref = refs[idx]; idx += 1
        sel_e_ref = refs[idx]; idx += 1
        sel_o_ref = refs[idx]; idx += 1
        wr_ref = br_ref = None
        if has_conv_reduce:
            wr_ref = refs[idx]; idx += 1
            br_ref = refs[idx]; idx += 1
        o_ref = refs[idx]; idx += 1
        act_ref = refs[idx] if n_layers > 0 else None

        # ---- n_layers x (causal conv + ReLU), batch folded into lanes -----
        # Layer 0 reads its shifted tap windows straight from x_ref (the
        # wrapper baked in the per-sample causal pads and the left margin), so
        # there is no staging copy.  Later layers read/write the single
        # activation slab in place (every store only depends on values already
        # loaded), halving scratch vs a ping-pong pair.
        for li in range(n_layers):
            d = dilations[li]
            p = pads[li]
            c_in = c_in0 if li == 0 else c_filt
            acc = jnp.zeros((c_filt, W), jnp.float32)
            for k in range(K):
                shift = p - k * d                       # static, 0 <= shift <= M
                start = M - shift                       # static, in-bounds
                if li == 0:
                    xk = x_ref[0, :c_in, start:start + W]
                else:
                    xk = act_ref[:c_in, start:start + W]
                wk = w_ref[li * K + k, :, :c_in]
                acc = acc + jnp.dot(wk, xk, preferred_element_type=jnp.float32)
            out = jnp.maximum(acc + b_ref[li], 0.0)     # ONE bias broadcast / layer
            if has_mask:
                # Re-zero per-sample causal-pad columns (their shifted reads
                # landed in margin / neighbouring columns).  jnp.where (not a
                # multiply) so even NaN garbage in the uninitialised margin can
                # never leak into the pad zeros the next layer relies on.
                out = jnp.where(mask_ref[...] > 0.0, out, 0.0)
            act_ref[:, M:M + W] = out.astype(compute_dtype)

        # ---- 2x temporal reduction + end-of-block ReLU ---------------------
        if n_layers > 0:
            y = act_ref[:c_red, M:M + W]
        else:
            # n_layers == 0: reduce the input directly (no scratch, M == 0).
            y = x_ref[0, :c_red, M:M + W]
        # Even/odd de-interleave + per-sample pad-column removal in two
        # lane-dense MXU matmuls against precomputed 0/1 selection operands.
        y_even = jnp.dot(y, sel_e_ref[...], preferred_element_type=jnp.float32)
        y_odd = jnp.dot(y, sel_o_ref[...], preferred_element_type=jnp.float32)
        if reduction_strat == "conv":
            red = (jnp.dot(wr_ref[0], y_even.astype(compute_dtype),
                           preferred_element_type=jnp.float32)
                   + jnp.dot(wr_ref[1], y_odd.astype(compute_dtype),
                             preferred_element_type=jnp.float32)
                   + br_ref[...])
        elif reduction_strat == "max_pool":
            red = jnp.maximum(y_even, y_odd)
        else:  # avg_pool
            red = (y_even + y_odd) * 0.5
        # f32 epilogue (v5e has no bf16 VPU path); single lane-dense store.
        o_ref[0, :, :] = jnp.maximum(red, 0.0)

    return kernel


# --------------------------------------------------------------------------
# Module equivalent
# --------------------------------------------------------------------------
class Conv1DBaseBlockPallas:
    """JAX/Pallas TPU equivalent of the PyTorch Conv1DBaseBlock (forward only)."""

    def __init__(self, block_num, input_len, n_input_channels, n_layers,
                 n_filters_per_layer, kernel_size, stride, dilation=False,
                 reduction_strat="conv", *, key, compute_dtype=jnp.float32):
        # TODO(synk): stride != 1 hidden convs are not implemented in the Pallas
        # hot path (the module's intended/default configuration uses stride=1).
        assert stride == 1, "Pallas hot path implemented for stride == 1"
        assert input_len % 2 == 0, "block compresses the time axis by 2x"

        self.block_num = block_num
        self.input_len = input_len
        self.n_input_channels = n_input_channels
        self.n_layers = n_layers
        self.n_filters_per_layer = n_filters_per_layer
        self.kernel_size = kernel_size
        self.stride = stride
        self.reduction_strat = reduction_strat
        self.compute_dtype = compute_dtype
        self.dilations = ([2 ** i for i in range(n_layers)] if dilation
                          else [1] * n_layers)
        # Causal pad per hidden layer, same formula as the PyTorch module
        # (== d * (K - 1) at stride 1).
        self.pads = [(input_len - 1) * stride - input_len
                     + d * (kernel_size - 1) + 1 for d in self.dilations]
        self.pad_max = max(self.pads) if n_layers > 0 else 0

        # ---- parameters: same shapes / init family as nn.Conv1d -----------
        # (U(-1/sqrt(fan_in), 1/sqrt(fan_in))) — synthetic, no checkpoint.
        self.layer_weights = []    # (C_out, C_in, K)  f32 (reference layout)
        self.layer_biases = []     # (C_out,)          f32
        for i in range(n_layers):
            in_ch = n_input_channels if i == 0 else n_filters_per_layer
            key, kw, kb = jax.random.split(key, 3)
            bound = 1.0 / float(in_ch * kernel_size) ** 0.5
            self.layer_weights.append(jax.random.uniform(
                kw, (n_filters_per_layer, in_ch, kernel_size), jnp.float32,
                -bound, bound))
            self.layer_biases.append(jax.random.uniform(
                kb, (n_filters_per_layer,), jnp.float32, -bound, bound))

        self.w_reduce = None
        self.b_reduce = None
        if reduction_strat == "conv":
            in_ch = n_filters_per_layer if n_layers != 0 else n_input_channels
            key, kw, kb = jax.random.split(key, 3)
            bound = 1.0 / float(in_ch * 2) ** 0.5
            self.w_reduce = jax.random.uniform(
                kw, (n_filters_per_layer, in_ch, 2), jnp.float32, -bound, bound)
            self.b_reduce = jax.random.uniform(
                kb, (n_filters_per_layer,), jnp.float32, -bound, bound)

        # ---- MXU-ready packed operands (built ONCE, not per call) ---------
        # All hidden-layer taps in one operand, all biases in another: fewer
        # operands -> fewer DMA descriptors and less tile-padded VMEM.
        cdt = compute_dtype
        K = kernel_size
        if n_layers > 0:
            if n_layers > 1:
                self.c_in_max = max(n_input_channels, n_filters_per_layer)
            else:
                self.c_in_max = n_input_channels
            w_all = np.zeros((n_layers * K, n_filters_per_layer, self.c_in_max),
                             np.float32)
            b_all = np.zeros((n_layers, n_filters_per_layer, 1), np.float32)
            for i, (w, b) in enumerate(zip(self.layer_weights, self.layer_biases)):
                w_np = np.asarray(w)                       # (C_out, C_in, K)
                c_in = w_np.shape[1]
                w_all[i * K:(i + 1) * K, :, :c_in] = np.transpose(w_np, (2, 0, 1))
                b_all[i, :, 0] = np.asarray(b)
            self.w_all = jnp.asarray(w_all, cdt)
            self.b_all = jnp.asarray(b_all, jnp.float32)
        else:
            self.c_in_max = 0
            self.w_all = None
            self.b_all = None

        if reduction_strat == "conv":
            self.wr_all = jnp.asarray(
                np.transpose(np.asarray(self.w_reduce), (2, 0, 1)), cdt)   # (2, C_out, C_red)
            self.br_col = jnp.asarray(
                np.asarray(self.b_reduce).reshape(n_filters_per_layer, 1),
                jnp.float32)
        else:
            self.wr_all = None
            self.br_col = None

        self._epilogue_cache = {}   # batch_tile -> (sel_even, sel_odd, mask)

    # ------------------------------------------------------------------
    def _epilogue_constants(self, batch_tile):
        cached = self._epilogue_cache.get(batch_tile)
        if cached is not None:
            return cached
        L = self.input_len
        L_out = L // 2
        P = self.pad_max
        wp = P + L
        W = batch_tile * wp
        sel_e = np.zeros((W, batch_tile * L_out), np.float32)
        sel_o = np.zeros((W, batch_tile * L_out), np.float32)
        mask = np.zeros((1, W), np.float32)
        for s in range(batch_tile):
            mask[0, s * wp + P:(s + 1) * wp] = 1.0
            for u in range(L_out):
                sel_e[s * wp + P + 2 * u, s * L_out + u] = 1.0
                sel_o[s * wp + P + 2 * u + 1, s * L_out + u] = 1.0
        consts = (jnp.asarray(sel_e, self.compute_dtype),
                  jnp.asarray(sel_o, self.compute_dtype),
                  jnp.asarray(mask, jnp.float32))
        self._epilogue_cache[batch_tile] = consts
        return consts

    def _vmem_bytes(self, batch_tile):
        """Rough per-grid-step VMEM footprint (scratch + double-buffered IO)."""
        L = self.input_len
        L_out = L // 2
        P = self.pad_max
        W = batch_tile * (P + L)
        esz = np.dtype(self.compute_dtype).itemsize
        c_red = self.n_filters_per_layer if self.n_layers > 0 else self.n_input_channels
        c_out = self.n_filters_per_layer if self.reduction_strat == "conv" else c_red
        scratch = (self.n_filters_per_layer * (P + W) * esz
                   if self.n_layers > 0 else 0)
        x_blk = 2 * self.n_input_channels * (P + W) * esz
        out_blk = 2 * c_out * batch_tile * L_out * 4
        sel = 2 * 2 * W * batch_tile * L_out * esz
        params = 0
        if self.w_all is not None:
            params += 2 * (self.w_all.size * esz + self.b_all.size * 4)
        if self.wr_all is not None:
            params += 2 * (self.wr_all.size * esz + self.br_col.size * 4)
        return scratch + x_blk + out_blk + sel + params + (1 << 20)

    # ------------------------------------------------------------------
    def __call__(self, x):
        B, c_in0, L = x.shape
        assert c_in0 == self.n_input_channels and L == self.input_len
        K = self.kernel_size
        n_layers = self.n_layers
        c_filt = self.n_filters_per_layer
        c_red = c_filt if n_layers > 0 else c_in0
        c_out = c_filt if self.reduction_strat == "conv" else c_red
        P = self.pad_max
        M = P                                   # left margin for shifted tap reads
        wp = P + L                              # per-sample stripe width
        L_out = L // 2
        cdt = self.compute_dtype

        # ---- generation-aware batch tile: one grid step per TensorCore ----
        num_cores = _num_tensorcores()
        bt_start = B // num_cores if (num_cores > 1 and B % num_cores == 0) else B
        bt = 1
        for cand in _divisors_desc(B):
            if cand <= bt_start and self._vmem_bytes(cand) <= _VMEM_BUDGET_BYTES:
                bt = cand
                break
        G = B // bt
        W = bt * wp

        # ---- fold the batch tile into the lane axis (layout plumbing) -----
        # (G, C_in, M + bt*(P+L)): per-sample causal pads and the per-group
        # left margin are baked in here, so the kernel never does a staging
        # copy or in-kernel pad zeroing for the input.
        xf = x.reshape(G, bt, c_in0, L).transpose(0, 2, 1, 3)        # (G, C, bt, L)
        if P > 0:
            xf = jnp.pad(xf, ((0, 0), (0, 0), (0, 0), (P, 0)))       # causal pads
        xf = xf.reshape(G, c_in0, W)
        if M > 0:
            xf = jnp.pad(xf, ((0, 0), (0, 0), (M, 0)))               # group margin
        xf = xf.astype(cdt)

        sel_e, sel_o, mask = self._epilogue_constants(bt)
        has_mask = n_layers > 0 and P > 0

        kernel = _make_fused_block_kernel(
            n_layers=n_layers, kernel_size=K, dilations=tuple(self.dilations),
            pads=tuple(self.pads), margin=M, c_in0=c_in0, c_filt=c_filt,
            c_red=c_red, lane_width=W, reduction_strat=self.reduction_strat,
            compute_dtype=cdt, has_mask=has_mask)

        def _const_spec(arr):
            nd = arr.ndim
            return pl.BlockSpec(arr.shape, lambda i, _n=nd: (0,) * _n)

        in_specs = [pl.BlockSpec((1, c_in0, M + W), lambda i: (i, 0, 0))]
        operands = [xf]
        if n_layers > 0:
            in_specs += [_const_spec(self.w_all), _const_spec(self.b_all)]
            operands += [self.w_all, self.b_all]
            if has_mask:
                in_specs.append(_const_spec(mask))
                operands.append(mask)
        in_specs += [_const_spec(sel_e), _const_spec(sel_o)]
        operands += [sel_e, sel_o]
        if self.reduction_strat == "conv":
            in_specs += [_const_spec(self.wr_all), _const_spec(self.br_col)]
            operands += [self.wr_all, self.br_col]

        scratch_shapes = ([pltpu.VMEM((c_filt, M + W), cdt)]
                          if n_layers > 0 else [])

        # Rough cost hint so XLA schedules surrounding ops around the call.
        flops = 0
        for li in range(n_layers):
            ci = c_in0 if li == 0 else c_filt
            flops += 2 * B * c_filt * ci * K * L
        flops += 2 * B * c_red * wp * 2 * L_out                 # selection matmuls
        if self.reduction_strat == "conv":
            flops += 2 * B * c_filt * c_red * 2 * L_out
        bytes_accessed = int(xf.size * xf.dtype.itemsize
                             + B * c_out * L_out * 4
                             + sum(int(o.size) * o.dtype.itemsize
                                   for o in operands[1:]))
        cost = pl.CostEstimate(flops=int(flops), transcendentals=0,
                               bytes_accessed=bytes_accessed)

        vmem_limit = int(min(48 << 20, max(32 << 20, 2 * self._vmem_bytes(bt))))

        # TODO(synk): for production-scale L, add a time grid axis ("arbitrary")
        # with a dilation*(K-1) halo and >=512-wide time tiles; the per-group
        # margin trick and the selection operands then become per-tile.
        out = pl.pallas_call(
            kernel,
            out_shape=jax.ShapeDtypeStruct((G, c_out, bt * L_out), jnp.float32),
            grid=(G,),
            in_specs=in_specs,
            out_specs=pl.BlockSpec((1, c_out, bt * L_out), lambda i: (i, 0, 0)),
            scratch_shapes=scratch_shapes,
            compiler_params=pltpu.CompilerParams(
                dimension_semantics=("parallel",),
                vmem_limit_bytes=vmem_limit),
            cost_estimate=cost,
        )(*operands)

        # Un-fold: (G, C_out, bt*L_out) -> (B, C_out, L_out) (layout plumbing).
        out = out.reshape(G, c_out, bt, L_out).transpose(0, 2, 1, 3)
        return out.reshape(B, c_out, L_out)


# --------------------------------------------------------------------------
# Pure-JAX reference (for correctness checking only)
# --------------------------------------------------------------------------
def reference_forward(block, x):
    dn = ("NCH", "OIH", "NCH")
    for i in range(block.n_layers):
        d = block.dilations[i]
        pad = block.pads[i]
        w = block.layer_weights[i]
        b = block.layer_biases[i]
        xp = jnp.pad(x, ((0, 0), (0, 0), (pad, 0)))
        x = lax.conv_general_dilated(xp, w, (block.stride,), "VALID",
                                     rhs_dilation=(d,), dimension_numbers=dn)
        x = jnp.maximum(x + b[None, :, None], 0.0)
    if block.reduction_strat == "conv":
        x = lax.conv_general_dilated(x, block.w_reduce, (2,), "VALID",
                                     dimension_numbers=dn)
        x = x + block.b_reduce[None, :, None]
    elif block.reduction_strat == "max_pool":
        x = lax.reduce_window(x, -jnp.inf, lax.max, (1, 1, 2), (1, 1, 2), "VALID")
    else:  # avg_pool
        x = lax.reduce_window(x, 0.0, lax.add, (1, 1, 2), (1, 1, 2), "VALID") / 2.0
    return jnp.maximum(x, 0.0)


# --------------------------------------------------------------------------
if __name__ == "__main__":
    key = jax.random.PRNGKey(0)

    configs = [
        # primary: matches the module's default use (conv reduce, no dilation)
        dict(B=2, C_in=4, L=16, n_layers=2, n_filters=8, k=3, dilation=False,
             reduction="conv", dtype=jnp.float32, atol=1e-4, rtol=1e-4),
        # dilated stack, larger batch
        dict(B=8, C_in=4, L=16, n_layers=3, n_filters=8, k=3, dilation=True,
             reduction="conv", dtype=jnp.float32, atol=1e-4, rtol=1e-4),
        # pooling reduction paths
        dict(B=4, C_in=6, L=16, n_layers=1, n_filters=8, k=2, dilation=False,
             reduction="max_pool", dtype=jnp.float32, atol=1e-4, rtol=1e-4),
        dict(B=4, C_in=4, L=16, n_layers=2, n_filters=8, k=3, dilation=False,
             reduction="avg_pool", dtype=jnp.float32, atol=1e-4, rtol=1e-4),
        # bf16 activations/weights with f32 accumulate (v6e/v7x fast path)
        dict(B=4, C_in=4, L=16, n_layers=2, n_filters=8, k=3, dilation=False,
             reduction="conv", dtype=jnp.bfloat16, atol=6e-2, rtol=6e-2),
    ]

    for cfg in configs:
        key, xkey, pkey = jax.random.split(key, 3)
        x = jax.random.normal(xkey, (cfg["B"], cfg["C_in"], cfg["L"]), jnp.float32)
        block = Conv1DBaseBlockPallas(
            block_num=0, input_len=cfg["L"], n_input_channels=cfg["C_in"],
            n_layers=cfg["n_layers"], n_filters_per_layer=cfg["n_filters"],
            kernel_size=cfg["k"], stride=1, dilation=cfg["dilation"],
            reduction_strat=cfg["reduction"], key=pkey,
            compute_dtype=cfg["dtype"])

        out = jax.block_until_ready(block(x))

        c_out = (cfg["n_filters"]
                 if (cfg["reduction"] == "conv" or cfg["n_layers"] > 0)
                 else cfg["C_in"])
        assert out.shape == (cfg["B"], c_out, cfg["L"] // 2), out.shape

        ref = reference_forward(block, x)
        if not jnp.allclose(out, ref, atol=cfg["atol"], rtol=cfg["rtol"]):
            err = float(jnp.max(jnp.abs(out - ref)))
            raise AssertionError(
                f"Pallas output does not match JAX reference "
                f"(max abs err {err:.3e}) for config {cfg}")

    print("KERNEL_OK")
</pallas_src>

<mosaic_0001>
module attributes {stable_mosaic.version = 11 : i64} {
  func.func @kernel(%arg0: i32, %arg1: memref<1x4x38xf32, #tpu.memory_space<vmem>>, %arg2: memref<6x8x8xf32, #tpu.memory_space<vmem>>, %arg3: memref<2x8x1xf32, #tpu.memory_space<vmem>>, %arg4: memref<1x36xf32, #tpu.memory_space<vmem>>, %arg5: memref<36x16xf32, #tpu.memory_space<vmem>>, %arg6: memref<36x16xf32, #tpu.memory_space<vmem>>, %arg7: memref<2x8x8xf32, #tpu.memory_space<vmem>>, %arg8: memref<8x1xf32, #tpu.memory_space<vmem>>, %arg9: memref<1x8x16xf32, #tpu.memory_space<vmem>>, %arg10: memref<8x38xf32, #tpu.memory_space<vmem>>) attributes {dimension_semantics = [#tpu.dimension_semantics<parallel>], iteration_bounds = array<i64: 1>, scalar_prefetch = 0 : i64, scratch_operands = 1 : i64, tpu.core_type = #tpu.core_type<tc>, window_params = [{transform_indices = @transform_0, window_bounds = array<i64: 1, 4, 38>}, {pipeline_mode = #tpu.pipeline_mode<synchronous>, transform_indices = @transform_1, window_bounds = array<i64: 6, 8, 8>}, {pipeline_mode = #tpu.pipeline_mode<synchronous>, transform_indices = @transform_2, window_bounds = array<i64: 2, 8, 1>}, {pipeline_mode = #tpu.pipeline_mode<synchronous>, transform_indices = @transform_3, window_bounds = array<i64: 1, 36>}, {pipeline_mode = #tpu.pipeline_mode<synchronous>, transform_indices = @transform_4, window_bounds = array<i64: 36, 16>}, {pipeline_mode = #tpu.pipeline_mode<synchronous>, transform_indices = @transform_5, window_bounds = array<i64: 36, 16>}, {pipeline_mode = #tpu.pipeline_mode<synchronous>, transform_indices = @transform_6, window_bounds = array<i64: 2, 8, 8>}, {pipeline_mode = #tpu.pipeline_mode<synchronous>, transform_indices = @transform_7, window_bounds = array<i64: 8, 1>}, {transform_indices = @transform_8, window_bounds = array<i64: 1, 8, 16>}]} {
    %cst = arith.constant 0.000000e+00 : f32
    %0 = vector.broadcast %cst : f32 to vector<8x36xf32>
    %c0 = arith.constant 0 : index
    %c0_0 = arith.constant 0 : index
    %c0_1 = arith.constant 0 : index
    %1 = vector.load %arg1[%c0, %c0_0, %c0_1] : memref<1x4x38xf32, #tpu.memory_space<vmem>>, vector<1x4x36xf32>
    %2 = vector.shape_cast %1 : vector<1x4x36xf32> to vector<4x36xf32>
    %c0_2 = arith.constant 0 : index
    %c0_3 = arith.constant 0 : index
    %c0_4 = arith.constant 0 : index
    %3 = vector.load %arg2[%c0_2, %c0_3, %c0_4] : memref<6x8x8xf32, #tpu.memory_space<vmem>>, vector<1x8x4xf32>
    %4 = vector.shape_cast %3 : vector<1x8x4xf32> to vector<8x4xf32>
    %cst_5 = arith.constant dense<0.000000e+00> : vector<8x36xf32>
    %5 = tpu.matmul %4, %2, %cst_5 {dimension_numbers = #tpu.dot_dimension_numbers<[1], [0], [0], [1], [0, 0, 1, 1], [], []>} : vector<8x4xf32>, vector<4x36xf32>, vector<8x36xf32> -> vector<8x36xf32>
    %6 = arith.addf %0, %5 : vector<8x36xf32>
    %c0_6 = arith.constant 0 : index
    %c0_7 = arith.constant 0 : index
    %c1 = arith.constant 1 : index
    %7 = vector.load %arg1[%c0_6, %c0_7, %c1] : memref<1x4x38xf32, #tpu.memory_space<vmem>>, vector<1x4x36xf32>
    %8 = vector.shape_cast %7 : vector<1x4x36xf32> to vector<4x36xf32>
    %c1_8 = arith.constant 1 : index
    %c0_9 = arith.constant 0 : index
    %c0_10 = arith.constant 0 : index
    %9 = vector.load %arg2[%c1_8, %c0_9, %c0_10] : memref<6x8x8xf32, #tpu.memory_space<vmem>>, vector<1x8x4xf32>
    %10 = vector.shape_cast %9 : vector<1x8x4xf32> to vector<8x4xf32>
    %cst_11 = arith.constant dense<0.000000e+00> : vector<8x36xf32>
    %11 = tpu.matmul %10, %8, %cst_11 {dimension_numbers = #tpu.dot_dimension_numbers<[1], [0], [0], [1], [0, 0, 1, 1], [], []>} : vector<8x4xf32>, vector<4x36xf32>, vector<8x36xf32> -> vector<8x36xf32>
    %12 = arith.addf %6, %11 : vector<8x36xf32>
    %c0_12 = arith.constant 0 : index
    %c0_13 = arith.constant 0 : index
    %c2 = arith.constant 2 : index
    %13 = vector.load %arg1[%c0_12, %c0_13, %c2] : memref<1x4x38xf32, #tpu.memory_space<vmem>>, vector<1x4x36xf32>
    %14 = vector.shape_cast %13 : vector<1x4x36xf32> to vector<4x36xf32>
    %c2_14 = arith.constant 2 : index
    %c0_15 = arith.constant 0 : index
    %c0_16 = arith.constant 0 : index
    %15 = vector.load %arg2[%c2_14, %c0_15, %c0_16] : memref<6x8x8xf32, #tpu.memory_space<vmem>>, vector<1x8x4xf32>
    %16 = vector.shape_cast %15 : vector<1x8x4xf32> to vector<8x4xf32>
    %cst_17 = arith.constant dense<0.000000e+00> : vector<8x36xf32>
    %17 = tpu.matmul %16, %14, %cst_17 {dimension_numbers = #tpu.dot_dimension_numbers<[1], [0], [0], [1], [0, 0, 1, 1], [], []>} : vector<8x4xf32>, vector<4x36xf32>, vector<8x36xf32> -> vector<8x36xf32>
    %18 = arith.addf %12, %17 : vector<8x36xf32>
    %c0_18 = arith.constant 0 : index
    %c0_19 = arith.constant 0 : index
    %c0_20 = arith.constant 0 : index
    %19 = vector.load %arg3[%c0_18, %c0_19, %c0_20] : memref<2x8x1xf32, #tpu.memory_space<vmem>>, vector<1x8x1xf32>
    %20 = vector.shape_cast %19 : vector<1x8x1xf32> to vector<8x1xf32>
    %21 = vector.broadcast %20 : vector<8x1xf32> to vector<8x36xf32>
    %22 = arith.addf %18, %21 : vector<8x36xf32>
    %cst_21 = arith.constant 0.000000e+00 : f32
    %23 = vector.broadcast %cst_21 : f32 to vector<8x36xf32>
    %24 = arith.maximumf %22, %23 : vector<8x36xf32>
    %c0_22 = arith.constant 0 : index
    %c0_23 = arith.constant 0 : index
    %25 = vector.load %arg4[%c0_22, %c0_23] : memref<1x36xf32, #tpu.memory_space<vmem>>, vector<1x36xf32>
    %cst_24 = arith.constant 0.000000e+00 : f32
    %26 = vector.broadcast %cst_24 : f32 to vector<1x36xf32>
    %27 = arith.cmpf ogt, %25, %26 : vector<1x36xf32>
    %cst_25 = arith.constant 0.000000e+00 : f32
    %28 = vector.shape_cast %27 : vector<1x36xi1> to vector<1x36xi1>
    %29 = vector.broadcast %28 : vector<1x36xi1> to vector<8x36xi1>
    %30 = vector.broadcast %cst_25 : f32 to vector<8x36xf32>
    %31 = arith.select %29, %24, %30 : vector<8x36xi1>, vector<8x36xf32>
    %c0_26 = arith.constant 0 : index
    %c2_27 = arith.constant 2 : index
    %32 = vector.load %arg10[%c0_26, %c2_27] : memref<8x38xf32, #tpu.memory_space<vmem>>, vector<8x36xf32>
    tpu.vector_store %arg10[%c0_26, %c2_27], %31 {strides = array<i32>} : memref<8x38xf32, #tpu.memory_space<vmem>>, vector<8x36xf32>,
    %cst_28 = arith.constant 0.000000e+00 : f32
    %33 = vector.broadcast %cst_28 : f32 to vector<8x36xf32>
    %c0_29 = arith.constant 0 : index
    %c0_30 = arith.constant 0 : index
    %34 = vector.load %arg10[%c0_29, %c0_30] : memref<8x38xf32, #tpu.memory_space<vmem>>, vector<8x36xf32>
    %c3 = arith.constant 3 : index
    %c0_31 = arith.constant 0 : index
    %c0_32 = arith.constant 0 : index
    %35 = vector.load %arg2[%c3, %c0_31, %c0_32] : memref<6x8x8xf32, #tpu.memory_space<vmem>>, vector<1x8x8xf32>
    %36 = vector.shape_cast %35 : vector<1x8x8xf32> to vector<8x8xf32>
    %cst_33 = arith.constant dense<0.000000e+00> : vector<8x36xf32>
    %37 = tpu.matmul %36, %34, %cst_33 {dimension_numbers = #tpu.dot_dimension_numbers<[1], [0], [0], [1], [0, 0, 1, 1], [], []>} : vector<8x8xf32>, vector<8x36xf32>, vector<8x36xf32> -> vector<8x36xf32>
    %38 = arith.addf %33, %37 : vector<8x36xf32>
    %c0_34 = arith.constant 0 : index
    %c1_35 = arith.constant 1 : index
    %39 = vector.load %arg10[%c0_34, %c1_35] : memref<8x38xf32, #tpu.memory_space<vmem>>, vector<8x36xf32>
    %c4 = arith.constant 4 : index
    %c0_36 = arith.constant 0 : index
    %c0_37 = arith.constant 0 : index
    %40 = vector.load %arg2[%c4, %c0_36, %c0_37] : memref<6x8x8xf32, #tpu.memory_space<vmem>>, vector<1x8x8xf32>
    %41 = vector.shape_cast %40 : vector<1x8x8xf32> to vector<8x8xf32>
    %cst_38 = arith.constant dense<0.000000e+00> : vector<8x36xf32>
    %42 = tpu.matmul %41, %39, %cst_38 {dimension_numbers = #tpu.dot_dimension_numbers<[1], [0], [0], [1], [0, 0, 1, 1], [], []>} : vector<8x8xf32>, vector<8x36xf32>, vector<8x36xf32> -> vector<8x36xf32>
    %43 = arith.addf %38, %42 : vector<8x36xf32>
    %c0_39 = arith.constant 0 : index
    %c2_40 = arith.constant 2 : index
    %44 = vector.load %arg10[%c0_39, %c2_40] : memref<8x38xf32, #tpu.memory_space<vmem>>, vector<8x36xf32>
    %c5 = arith.constant 5 : index
    %c0_41 = arith.constant 0 : index
    %c0_42 = arith.constant 0 : index
    %45 = vector.load %arg2[%c5, %c0_41, %c0_42] : memref<6x8x8xf32, #tpu.memory_space<vmem>>, vector<1x8x8xf32>
    %46 = vector.shape_cast %45 : vector<1x8x8xf32> to vector<8x8xf32>
    %cst_43 = arith.constant dense<0.000000e+00> : vector<8x36xf32>
    %47 = tpu.matmul %46, %44, %cst_43 {dimension_numbers = #tpu.dot_dimension_numbers<[1], [0], [0], [1], [0, 0, 1, 1], [], []>} : vector<8x8xf32>, vector<8x36xf32>, vector<8x36xf32> -> vector<8x36xf32>
    %48 = arith.addf %43, %47 : vector<8x36xf32>
    %c1_44 = arith.constant 1 : index
    %c0_45 = arith.constant 0 : index
    %c0_46 = arith.constant 0 : index
    %49 = vector.load %arg3[%c1_44, %c0_45, %c0_46] : memref<2x8x1xf32, #tpu.memory_space<vmem>>, vector<1x8x1xf32>
    %50 = vector.shape_cast %49 : vector<1x8x1xf32> to vector<8x1xf32>
    %51 = vector.broadcast %50 : vector<8x1xf32> to vector<8x36xf32>
    %52 = arith.addf %48, %51 : vector<8x36xf32>
    %cst_47 = arith.constant 0.000000e+00 : f32
    %53 = vector.broadcast %cst_47 : f32 to vector<8x36xf32>
    %54 = arith.maximumf %52, %53 : vector<8x36xf32>
    %c0_48 = arith.constant 0 : index
    %c0_49 = arith.constant 0 : index
    %55 = vector.load %arg4[%c0_48, %c0_49] : memref<1x36xf32, #tpu.memory_space<vmem>>, vector<1x36xf32>
    %cst_50 = arith.constant 0.000000e+00 : f32
    %56 = vector.broadcast %cst_50 : f32 to vector<1x36xf32>
    %57 = arith.cmpf ogt, %55, %56 : vector<1x36xf32>
    %cst_51 = arith.constant 0.000000e+00 : f32
    %58 = vector.shape_cast %57 : vector<1x36xi1> to vector<1x36xi1>
    %59 = vector.broadcast %58 : vector<1x36xi1> to vector<8x36xi1>
    %60 = vector.broadcast %cst_51 : f32 to vector<8x36xf32>
    %61 = arith.select %59, %54, %60 : vector<8x36xi1>, vector<8x36xf32>
    %c0_52 = arith.constant 0 : index
    %c2_53 = arith.constant 2 : index
    %62 = vector.load %arg10[%c0_52, %c2_53] : memref<8x38xf32, #tpu.memory_space<vmem>>, vector<8x36xf32>
    tpu.vector_store %arg10[%c0_52, %c2_53], %61 {strides = array<i32>} : memref<8x38xf32, #tpu.memory_space<vmem>>, vector<8x36xf32>,
    %c0_54 = arith.constant 0 : index
    %c2_55 = arith.constant 2 : index
    %63 = vector.load %arg10[%c0_54, %c2_55] : memref<8x38xf32, #tpu.memory_space<vmem>>, vector<8x36xf32>
    %c0_56 = arith.constant 0 : index
    %c0_57 = arith.constant 0 : index
    %64 = vector.load %arg5[%c0_56, %c0_57] : memref<36x16xf32, #tpu.memory_space<vmem>>, vector<36x16xf32>
    %cst_58 = arith.constant dense<0.000000e+00> : vector<8x16xf32>
    %65 = tpu.matmul %63, %64, %cst_58 {dimension_numbers = #tpu.dot_dimension_numbers<[1], [0], [0], [1], [0, 0, 1, 1], [], []>} : vector<8x36xf32>, vector<36x16xf32>, vector<8x16xf32> -> vector<8x16xf32>
    %c0_59 = arith.constant 0 : index
    %c0_60 = arith.constant 0 : index
    %66 = vector.load %arg6[%c0_59, %c0_60] : memref<36x16xf32, #tpu.memory_space<vmem>>, vector<36x16xf32>
    %cst_61 = arith.constant dense<0.000000e+00> : vector<8x16xf32>
    %67 = tpu.matmul %63, %66, %cst_61 {dimension_numbers = #tpu.dot_dimension_numbers<[1], [0], [0], [1], [0, 0, 1, 1], [], []>} : vector<8x36xf32>, vector<36x16xf32>, vector<8x16xf32> -> vector<8x16xf32>
    %c0_62 = arith.constant 0 : index
    %c0_63 = arith.constant 0 : index
    %c0_64 = arith.constant 0 : index
    %68 = vector.load %arg7[%c0_62, %c0_63, %c0_64] : memref<2x8x8xf32, #tpu.memory_space<vmem>>, vector<1x8x8xf32>
    %69 = vector.shape_cast %68 : vector<1x8x8xf32> to vector<8x8xf32>
    %cst_65 = arith.constant dense<0.000000e+00> : vector<8x16xf32>
    %70 = tpu.matmul %69, %65, %cst_65 {dimension_numbers = #tpu.dot_dimension_numbers<[1], [0], [0], [1], [0, 0, 1, 1], [], []>} : vector<8x8xf32>, vector<8x16xf32>, vector<8x16xf32> -> vector<8x16xf32>
    %c1_66 = arith.constant 1 : index
    %c0_67 = arith.constant 0 : index
    %c0_68 = arith.constant 0 : index
    %71 = vector.load %arg7[%c1_66, %c0_67, %c0_68] : memref<2x8x8xf32, #tpu.memory_space<vmem>>, vector<1x8x8xf32>
    %72 = vector.shape_cast %71 : vector<1x8x8xf32> to vector<8x8xf32>
    %cst_69 = arith.constant dense<0.000000e+00> : vector<8x16xf32>
    %73 = tpu.matmul %72, %67, %cst_69 {dimension_numbers = #tpu.dot_dimension_numbers<[1], [0], [0], [1], [0, 0, 1, 1], [], []>} : vector<8x8xf32>, vector<8x16xf32>, vector<8x16xf32> -> vector<8x16xf32>
    %74 = arith.addf %70, %73 : vector<8x16xf32>
    %c0_70 = arith.constant 0 : index
    %c0_71 = arith.constant 0 : index
    %75 = vector.load %arg8[%c0_70, %c0_71] : memref<8x1xf32, #tpu.memory_space<vmem>>, vector<8x1xf32>
    %76 = vector.broadcast %75 : vector<8x1xf32> to vector<8x16xf32>
    %77 = arith.addf %74, %76 : vector<8x16xf32>
    %cst_72 = arith.constant 0.000000e+00 : f32
    %78 = vector.broadcast %cst_72 : f32 to vector<8x16xf32>
    %79 = arith.maximumf %77, %78 : vector<8x16xf32>
    %c0_73 = arith.constant 0 : index
    %c0_74 = arith.constant 0 : index
    %c0_75 = arith.constant 0 : index
    %80 = vector.load %arg9[%c0_73, %c0_74, %c0_75] : memref<1x8x16xf32, #tpu.memory_space<vmem>>, vector<1x8x16xf32>
    %81 = vector.shape_cast %80 : vector<1x8x16xf32> to vector<8x16xf32>
    %82 = vector.shape_cast %79 : vector<8x16xf32> to vector<1x8x16xf32>
    tpu.vector_store %arg9[%c0_73, %c0_74, %c0_75], %82 {strides = array<i32>} : memref<1x8x16xf32, #tpu.memory_space<vmem>>, vector<1x8x16xf32>,
    return
  }
  func.func @transform_0(%arg0: i32) -> (i32, i32, i32) {
    %c0_i32 = arith.constant 0 : i32
    %c0_i32_0 = arith.constant 0 : i32
    %c0_i32_1 = arith.constant 0 : i32
    return %arg0, %c0_i32, %c0_i32_0 : i32, i32, i32
  }
  func.func @transform_1(%arg0: i32) -> (i32, i32, i32) {
    %c0_i32 = arith.constant 0 : i32
    %c0_i32_0 = arith.constant 0 : i32
    %c0_i32_1 = arith.constant 0 : i32
    %c0_i32_2 = arith.constant 0 : i32
    return %c0_i32, %c0_i32_0, %c0_i32_1 : i32, i32, i32
  }
  func.func @transform_2(%arg0: i32) -> (i32, i32, i32) {
    %c0_i32 = arith.constant 0 : i32
    %c0_i32_0 = arith.constant 0 : i32
    %c0_i32_1 = arith.constant 0 : i32
    %c0_i32_2 = arith.constant 0 : i32
    return %c0_i32, %c0_i32_0, %c0_i32_1 : i32, i32, i32
  }
  func.func @transform_3(%arg0: i32) -> (i32, i32) {
    %c0_i32 = arith.constant 0 : i32
    %c0_i32_0 = arith.constant 0 : i32
    %c0_i32_1 = arith.constant 0 : i32
    return %c0_i32, %c0_i32_0 : i32, i32
  }
  func.func @transform_4(%arg0: i32) -> (i32, i32) {
    %c0_i32 = arith.constant 0 : i32
    %c0_i32_0 = arith.constant 0 : i32
    %c0_i32_1 = arith.constant 0 : i32
    return %c0_i32, %c0_i32_0 : i32, i32
  }
  func.func @transform_5(%arg0: i32) -> (i32, i32) {
    %c0_i32 = arith.constant 0 : i32
    %c0_i32_0 = arith.constant 0 : i32
    %c0_i32_1 = arith.constant 0 : i32
    return %c0_i32, %c0_i32_0 : i32, i32
  }
  func.func @transform_6(%arg0: i32) -> (i32, i32, i32) {
    %c0_i32 = arith.constant 0 : i32
    %c0_i32_0 = arith.constant 0 : i32
    %c0_i32_1 = arith.constant 0 : i32
    %c0_i32_2 = arith.constant 0 : i32
    return %c0_i32, %c0_i32_0, %c0_i32_1 : i32, i32, i32
  }
  func.func @transform_7(%arg0: i32) -> (i32, i32) {
    %c0_i32 = arith.constant 0 : i32
    %c0_i32_0 = arith.constant 0 : i32
    %c0_i32_1 = arith.constant 0 : i32
    return %c0_i32, %c0_i32_0 : i32, i32
  }
  func.func @transform_8(%arg0: i32) -> (i32, i32, i32) {
    %c0_i32 = arith.constant 0 : i32
    %c0_i32_0 = arith.constant 0 : i32
    %c0_i32_1 = arith.constant 0 : i32
    return %arg0, %c0_i32, %c0_i32_0 : i32, i32, i32
  }
}

</mosaic_0001>

<llo_original>
// kernel: tpu_custom_call.1
$region0: #{tpu_custom_call.1}
  #allocation0 [shape = 'u32[]', space=smem, size = 0x4, offset = 0x4, fixed_abs, tag = 'smem constant byte address 0x4 - core index']
  #allocation1 [shape = 'u32[144,128]{1,0:T(1,128)}', space=vmem, size = 0x12000, scoped, tag = 'internal scratch']
  #allocation2 [shape = 'f32[8,38]{1,0:T(8,128)}', space=vmem, size = 0x1000, scoped, tag = 'scratch operand']
  %s0 = inlined_call_operand.vmem [shape: f32[1,4,38], index: 0, kind: input, shape index: {}]
  %s1 = inlined_call_operand.vmem [shape: f32[6,8,8], index: 1, kind: input, shape index: {}]
  %s2 = inlined_call_operand.vmem [shape: f32[2,8,1], index: 2, kind: input, shape index: {}]
  %s3 = inlined_call_operand.vmem [shape: f32[1,36], index: 3, kind: input, shape index: {}]
  %s4 = inlined_call_operand.vmem [shape: f32[36,16], index: 4, kind: input, shape index: {}]
  %s5 = inlined_call_operand.vmem [shape: f32[36,16], index: 5, kind: input, shape index: {}]
  %s6 = inlined_call_operand.vmem [shape: f32[2,8,8], index: 6, kind: input, shape index: {}]
  %s7 = inlined_call_operand.vmem [shape: f32[8,1], index: 7, kind: input, shape index: {}]
  %s8 = inlined_call_operand.hbm [shape: f32[1,8,16], index: 8, kind: output, shape index: {}]
  %s9 = sld [smem:[#allocation0]]
  $region42: #{tpu_custom_call.1} parent=0
    _
  %s11 = ssub.s32 1, %s9
  %s12 = scalar_select 0, %s11, %s9
  $region1: #{tpu_custom_call.1} parent=0
    #allocation3 [shape = 'u8[4096]{0}', space=vmem, size = 0x1000, scoped, tag = 'output window, operand 0, single buffered']
    #allocation4 [shape = 's32[1]{0}', space=sflag, size = 0x4, scoped, tag = 'scoped memory for tpu_custom_call.1']
    %13 = vsyncpa [#allocation4], 0
    // Predicated region
    $region2: #{tpu_custom_call.1} parent=1 // pred_check
      _
    $region3: #{tpu_custom_call.1} parent=1 // pred_check_branch
      %15 = sbr.rel (0) target = $region5
    $region4: #{tpu_custom_call.1} parent=1 // pred_region
      _
    $region5: #{tpu_custom_call.1} parent=1 // pred_fallthru
      _
    // Predicated region
    $region6: #{tpu_custom_call.1} parent=1 // pred_check
      _
    $region7: #{tpu_custom_call.1} parent=1 // pred_check_branch
      %17 = sbr.rel (0) target = $region9
    $region8: #{tpu_custom_call.1} parent=1 // pred_region
      _
    $region9: #{tpu_custom_call.1} parent=1 // pred_fallthru
      _
    // Predicated region
    $region10: #{tpu_custom_call.1} parent=1 // pred_check
      _
    $region11: #{tpu_custom_call.1} parent=1 // pred_check_branch
      %19 = sbr.rel (0) target = $region13
    $region12: #{tpu_custom_call.1} parent=1 // pred_region
      _
    $region13: #{tpu_custom_call.1} parent=1 // pred_fallthru
      _
    // Predicated region
    $region14: #{tpu_custom_call.1} parent=1 // pred_check
      _
    $region15: #{tpu_custom_call.1} parent=1 // pred_check_branch
      %21 = sbr.rel (0) target = $region17
    $region16: #{tpu_custom_call.1} parent=1 // pred_region
      _
    $region17: #{tpu_custom_call.1} parent=1 // pred_fallthru
      _
    // Predicated region
    $region18: #{tpu_custom_call.1} parent=1 // pred_check
      _
    $region19: #{tpu_custom_call.1} parent=1 // pred_check_branch
      %23 = sbr.rel (0) target = $region21
    $region20: #{tpu_custom_call.1} parent=1 // pred_region
      _
    $region21: #{tpu_custom_call.1} parent=1 // pred_fallthru
      _
    // Predicated region
    $region22: #{tpu_custom_call.1} parent=1 // pred_check
      _
    $region23: #{tpu_custom_call.1} parent=1 // pred_check_branch
      %25 = sbr.rel (0) target = $region25
    $region24: #{tpu_custom_call.1} parent=1 // pred_region
      _
    $region25: #{tpu_custom_call.1} parent=1 // pred_fallthru
      _
    // Predicated region
    $region26: #{tpu_custom_call.1} parent=1 // pred_check
      _
    $region27: #{tpu_custom_call.1} parent=1 // pred_check_branch
      %27 = sbr.rel (0) target = $region29
    $region28: #{tpu_custom_call.1} parent=1 // pred_region
      _
    $region29: #{tpu_custom_call.1} parent=1 // pred_fallthru
      _
    // Predicated region
    $region30: #{tpu_custom_call.1} parent=1 // pred_check
      _
    $region31: #{tpu_custom_call.1} parent=1 // pred_check_branch
      %29 = sbr.rel (0) target = $region33
    $region32: #{tpu_custom_call.1} parent=1 // pred_region
      _
    $region33: #{tpu_custom_call.1} parent=1 // pred_fallthru
      _
    %v30 = vld [vmem:[%s0] sm:$0xf]
    %v31 = vld [vmem:[%s1] sm:$0xff]
    %s32 = scalar_lea.vmem %s1, 8
    %v33 = vld [vmem:[%s32] sm:$0xff]
    %35 = vrot.lane.b32.xlu0 %v30, 127
    %v36 = vpop.permute.xlu0 %35
    %vm37 = vcmask 31744
    %v39 = vsel %vm37, %v33, 0
    %vm41 = vcmask 1043456
    %v42 = vsel %vm41, %v36, 0
    %44 = vmatprep.subr.mxu0 0.0
    %45 = vmatpush1.msra.mxu0 %v42
    %46 = vmatprep.subr.mxu0 0.0
    %47 = vmatpush1.msra.mxu0 0.0
    %48 = vmatprep.subr.mxu0 0.0
    %49 = vmatpush1.msra.mxu0 0.0
    %50 = vmatprep.subr.mxu0 0.0
    %51 = vmatpush1.msra.mxu0 0.0
    %52 = vmatprep.subr.mxu0 0.0
    %53 = vmatpush1.msra.mxu0 0.0
    %54 = vmatprep.subr.mxu0 0.0
    %55 = vmatpush1.msra.mxu0 0.0
    %56 = vmatprep.subr.mxu0 0.0
    %57 = vmatpush1.msra.mxu0 0.0
    %58 = vmatprep.subr.mxu0 0.0
    %59 = vmatpush1.msra.mxu0 0.0
    %60 = vmatprep.subr.mxu0 0.0
    %61 = vmatpush1.msra.mxu0 0.0
    %62 = vmatprep.subr.mxu0 0.0
    %63 = vmatpush1.msra.mxu0 0.0
    %64 = vmatprep.subr.mxu0 0.0
    %65 = vmatpush1.msra.mxu0 0.0
    %66 = vmatprep.subr.mxu0 0.0
    %67 = vmatpush1.msra.mxu0 0.0
    %68 = vmatprep.subr.mxu0 0.0
    %69 = vmatpush1.msra.mxu0 0.0
    %70 = vmatprep.subr.mxu0 0.0
    %71 = vmatpush1.msra.mxu0 0.0
    %72 = vmatprep.subr.mxu0 0.0
    %73 = vmatpush1.msra.mxu0 0.0
    %74 = vmatprep.subr.mxu0 0.0
    %75 = vmatpush1.msra.mxu0 0.0
    %76 = vmatprep.subr.mxu0 0.0
    %77 = vmatpush1.msra.mxu0 0.0
    %78 = vmatprep.subr.mxu0 0.0
    %79 = vmatpush1.msra.mxu0 0.0
    %80 = vmatprep.subr.mxu0 0.0
    %81 = vmatpush1.msra.mxu0 0.0
    %82 = vmatprep.subr.mxu0 0.0
    %83 = vmatpush1.msra.mxu0 0.0
    %84 = vmatprep.subr.mxu0 0.0
    %85 = vmatpush1.msra.mxu0 0.0
    %86 = vmatprep.subr.mxu0 0.0
    %87 = vmatpush1.msra.mxu0 0.0
    %88 = vmatprep.subr.mxu0 0.0
    %89 = vmatpush1.msra.mxu0 0.0
    %90 = vmatprep.subr.mxu0 0.0
    %91 = vmatpush1.msra.mxu0 0.0
    %92 = vmatprep.subr.mxu0 0.0
    %93 = vmatpush1.msra.mxu0 0.0
    %94 = vmatprep.subr.mxu0 0.0
    %95 = vmatpush1.msra.mxu0 0.0
    %96 = vmatprep.subr.mxu0 0.0
    %97 = vmatpush1.msra.mxu0 0.0
    %98 = vmatprep.subr.mxu0 0.0
    %99 = vmatpush1.msra.mxu0 0.0
    %100 = vmatprep.subr.mxu0 0.0
    %101 = vmatpush1.msra.mxu0 0.0
    %102 = vmatprep.subr.mxu0 0.0
    %103 = vmatpush1.msra.mxu0 0.0
    %104 = vmatprep.subr.mxu0 0.0
    %105 = vmatpush1.msra.mxu0 0.0
    %106 = vmatprep.subr.mxu0 0.0
    %107 = vmatpush1.msra.mxu0 0.0
    %108 = vmatprep.mubr.f32.mxu0 0.0
    %109 = vmatmul.mubr.f32.gmra.mrb[0].mxu0 %v39
    %v110 = vpop.f32.mrb[0].mxu0
    %v111 = vadd.f32 0.0, %v110
    %v112 = vpop.f32.mrb[0].mxu0
    %113 = vdwg.mxu0
    %v115 = vsel %vm37, %v31, 0
    %v117 = vsel %vm41, %v30, 0
    %119 = vmatprep.subr.mxu0 0.0
    %120 = vmatpush1.msra.mxu0 %v117
    %121 = vmatprep.subr.mxu0 0.0
    %122 = vmatpush1.msra.mxu0 0.0
    %123 = vmatprep.subr.mxu0 0.0
    %124 = vmatpush1.msra.mxu0 0.0
    %125 = vmatprep.subr.mxu0 0.0
    %126 = vmatpush1.msra.mxu0 0.0
    %127 = vmatprep.subr.mxu0 0.0
    %128 = vmatpush1.msra.mxu0 0.0
    %129 = vmatprep.subr.mxu0 0.0
    %130 = vmatpush1.msra.mxu0 0.0
    %131 = vmatprep.subr.mxu0 0.0
    %132 = vmatpush1.msra.mxu0 0.0
    %133 = vmatprep.subr.mxu0 0.0
    %134 = vmatpush1.msra.mxu0 0.0
    %135 = vmatprep.subr.mxu0 0.0
    %136 = vmatpush1.msra.mxu0 0.0
    %137 = vmatprep.subr.mxu0 0.0
    %138 = vmatpush1.msra.mxu0 0.0
    %139 = vmatprep.subr.mxu0 0.0
    %140 = vmatpush1.msra.mxu0 0.0
    %141 = vmatprep.subr.mxu0 0.0
    %142 = vmatpush1.msra.mxu0 0.0
    %143 = vmatprep.subr.mxu0 0.0
    %144 = vmatpush1.msra.mxu0 0.0
    %145 = vmatprep.subr.mxu0 0.0
    %146 = vmatpush1.msra.mxu0 0.0
    %147 = vmatprep.subr.mxu0 0.0
    %148 = vmatpush1.msra.mxu0 0.0
    %149 = vmatprep.subr.mxu0 0.0
    %150 = vmatpush1.msra.mxu0 0.0
    %151 = vmatprep.subr.mxu0 0.0
    %152 = vmatpush1.msra.mxu0 0.0
    %153 = vmatprep.subr.mxu0 0.0
    %154 = vmatpush1.msra.mxu0 0.0
    %155 = vmatprep.subr.mxu0 0.0
    %156 = vmatpush1.msra.mxu0 0.0
    %157 = vmatprep.subr.mxu0 0.0
    %158 = vmatpush1.msra.mxu0 0.0
    %159 = vmatprep.subr.mxu0 0.0
    %160 = vmatpush1.msra.mxu0 0.0
    %161 = vmatprep.subr.mxu0 0.0
    %162 = vmatpush1.msra.mxu0 0.0
    %163 = vmatprep.subr.mxu0 0.0
    %164 = vmatpush1.msra.mxu0 0.0
    %165 = vmatprep.subr.mxu0 0.0
    %166 = vmatpush1.msra.mxu0 0.0
    %167 = vmatprep.subr.mxu0 0.0
    %168 = vmatpush1.msra.mxu0 0.0
    %169 = vmatprep.subr.mxu0 0.0
    %170 = vmatpush1.msra.mxu0 0.0
    %171 = vmatprep.subr.mxu0 0.0
    %172 = vmatpush1.msra.mxu0 0.0
    %173 = vmatprep.subr.mxu0 0.0
    %174 = vmatpush1.msra.mxu0 0.0
    %175 = vmatprep.subr.mxu0 0.0
    %176 = vmatpush1.msra.mxu0 0.0
    %177 = vmatprep.subr.mxu0 0.0
    %178 = vmatpush1.msra.mxu0 0.0
    %179 = vmatprep.subr.mxu0 0.0
    %180 = vmatpush1.msra.mxu0 0.0
    %181 = vmatprep.subr.mxu0 0.0
    %182 = vmatpush1.msra.mxu0 0.0
    %183 = vmatprep.mubr.f32.mxu0 0.0
    %184 = vmatmul.mubr.f32.gmra.mrb[0].mxu0 %v115
    %v185 = vpop.f32.mrb[0].mxu0
    %v186 = vadd.f32 %v111, %v185
    %v187 = vpop.f32.mrb[0].mxu0
    %188 = vdwg.mxu0
    %s189 = scalar_lea.vmem %s1, 16
    %v190 = vld [vmem:[%s189] sm:$0xff]
    %191 = vrot.lane.b32.xlu0 %v30, 126
    %v192 = vpop.permute.xlu0 %191
    %v194 = vsel %vm37, %v190, 0
    %v196 = vsel %vm41, %v192, 0
    %198 = vmatprep.subr.mxu0 0.0
    %199 = vmatpush1.msra.mxu0 %v196
    %200 = vmatprep.subr.mxu0 0.0
    %201 = vmatpush1.msra.mxu0 0.0
    %202 = vmatprep.subr.mxu0 0.0
    %203 = vmatpush1.msra.mxu0 0.0
    %204 = vmatprep.subr.mxu0 0.0
    %205 = vmatpush1.msra.mxu0 0.0
    %206 = vmatprep.subr.mxu0 0.0
    %207 = vmatpush1.msra.mxu0 0.0
    %208 = vmatprep.subr.mxu0 0.0
    %209 = vmatpush1.msra.mxu0 0.0
    %210 = vmatprep.subr.mxu0 0.0
    %211 = vmatpush1.msra.mxu0 0.0
    %212 = vmatprep.subr.mxu0 0.0
    %213 = vmatpush1.msra.mxu0 0.0
    %214 = vmatprep.subr.mxu0 0.0
    %215 = vmatpush1.msra.mxu0 0.0
    %216 = vmatprep.subr.mxu0 0.0
    %217 = vmatpush1.msra.mxu0 0.0
    %218 = vmatprep.subr.mxu0 0.0
    %219 = vmatpush1.msra.mxu0 0.0
    %220 = vmatprep.subr.mxu0 0.0
    %221 = vmatpush1.msra.mxu0 0.0
    %222 = vmatprep.subr.mxu0 0.0
    %223 = vmatpush1.msra.mxu0 0.0
    %224 = vmatprep.subr.mxu0 0.0
    %225 = vmatpush1.msra.mxu0 0.0
    %226 = vmatprep.subr.mxu0 0.0
    %227 = vmatpush1.msra.mxu0 0.0
    %228 = vmatprep.subr.mxu0 0.0
    %229 = vmatpush1.msra.mxu0 0.0
    %230 = vmatprep.subr.mxu0 0.0
    %231 = vmatpush1.msra.mxu0 0.0
    %232 = vmatprep.subr.mxu0 0.0
    %233 = vmatpush1.msra.mxu0 0.0
    %234 = vmatprep.subr.mxu0 0.0
    %235 = vmatpush1.msra.mxu0 0.0
    %236 = vmatprep.subr.mxu0 0.0
    %237 = vmatpush1.msra.mxu0 0.0
    %238 = vmatprep.subr.mxu0 0.0
    %239 = vmatpush1.msra.mxu0 0.0
    %240 = vmatprep.subr.mxu0 0.0
    %241 = vmatpush1.msra.mxu0 0.0
    %242 = vmatprep.subr.mxu0 0.0
    %243 = vmatpush1.msra.mxu0 0.0
    %244 = vmatprep.subr.mxu0 0.0
    %245 = vmatpush1.msra.mxu0 0.0
    %246 = vmatprep.subr.mxu0 0.0
    %247 = vmatpush1.msra.mxu0 0.0
    %248 = vmatprep.subr.mxu0 0.0
    %249 = vmatpush1.msra.mxu0 0.0
    %250 = vmatprep.subr.mxu0 0.0
    %251 = vmatpush1.msra.mxu0 0.0
    %252 = vmatprep.subr.mxu0 0.0
    %253 = vmatpush1.msra.mxu0 0.0
    %254 = vmatprep.subr.mxu0 0.0
    %255 = vmatpush1.msra.mxu0 0.0
    %256 = vmatprep.subr.mxu0 0.0
    %257 = vmatpush1.msra.mxu0 0.0
    %258 = vmatprep.subr.mxu0 0.0
    %259 = vmatpush1.msra.mxu0 0.0
    %260 = vmatprep.subr.mxu0 0.0
    %261 = vmatpush1.msra.mxu0 0.0
    %262 = vmatprep.mubr.f32.mxu0 0.0
    %263 = vmatmul.mubr.f32.gmra.mrb[0].mxu0 %v194
    %v264 = vpop.f32.mrb[0].mxu0
    %v265 = vadd.f32 0.0, %v264
    %v266 = vpop.f32.mrb[0].mxu0
    %267 = vdwg.mxu0
    %v268 = vadd.f32 %v186, %v265
    %v269 = vld [vmem:[%s2] sm:$0xff]
    %271 = vset.pattern.permute.xlu0 0
    %272 = vperm.xlu0 %271, %v269
    %v273 = vpop.permute.xlu0 %272
    %v275 = vadd.f32 %v268, %v273
    %v276 = vmax.f32 %v275, 0.0
    %v277 = vld [vmem:[%s3] sm:$0x1]
    %vm278 = vcmp.gt.f32.partialorder %v277, 0.0
    %v279 = vsel %vm278, 1, 0
    %v280 = vlaneseq
    %v281 = vshrl.u32 %v280, 7
    %v282 = vsub.s32 0, %v281
    %v283 = vrot.slane %v279, %v282
    %vm284 = vcmp.eq.s32.totalorder %v283, 1
    %v285 = vsel %vm284, %v276, 0.0
    %287 = vrot.lane.b32.xlu0 %v285, 2
    %v288 = vpop.permute.xlu0 %287
    %vm290 = vcmask 310288
    %291 = vst.msk [vmem:[#allocation2] sm:$0xff] %vm290, %v288
    %v292 = vld [vmem:[#allocation2] sm:$0xff]
    %s293 = scalar_lea.vmem %s1, 24
    %v294 = vld [vmem:[%s293] sm:$0xff]
    %s295 = scalar_lea.vmem %s1, 32
    %v296 = vld [vmem:[%s295] sm:$0xff]
    %298 = vrot.lane.b32.xlu0 %v292, 127
    %v299 = vpop.permute.xlu0 %298
    %vm301 = vcmask 64512
    %v303 = vsel %vm301, %v296, 0
    %305 = vmatprep.subr.mxu0 0.0
    %306 = vmatpush1.msra.mxu0 %v299
    %307 = vmatprep.subr.mxu0 0.0
    %308 = vmatpush1.msra.mxu0 0.0
    %309 = vmatprep.subr.mxu0 0.0
    %310 = vmatpush1.msra.mxu0 0.0
    %311 = vmatprep.subr.mxu0 0.0
    %312 = vmatpush1.msra.mxu0 0.0
    %313 = vmatprep.subr.mxu0 0.0
    %314 = vmatpush1.msra.mxu0 0.0
    %315 = vmatprep.subr.mxu0 0.0
    %316 = vmatpush1.msra.mxu0 0.0
    %317 = vmatprep.subr.mxu0 0.0
    %318 = vmatpush1.msra.mxu0 0.0
    %319 = vmatprep.subr.mxu0 0.0
    %320 = vmatpush1.msra.mxu0 0.0
    %321 = vmatprep.subr.mxu0 0.0
    %322 = vmatpush1.msra.mxu0 0.0
    %323 = vmatprep.subr.mxu0 0.0
    %324 = vmatpush1.msra.mxu0 0.0
    %325 = vmatprep.subr.mxu0 0.0
    %326 = vmatpush1.msra.mxu0 0.0
    %327 = vmatprep.subr.mxu0 0.0
    %328 = vmatpush1.msra.mxu0 0.0
    %329 = vmatprep.subr.mxu0 0.0
    %330 = vmatpush1.msra.mxu0 0.0
    %331 = vmatprep.subr.mxu0 0.0
    %332 = vmatpush1.msra.mxu0 0.0
    %333 = vmatprep.subr.mxu0 0.0
    %334 = vmatpush1.msra.mxu0 0.0
    %335 = vmatprep.subr.mxu0 0.0
    %336 = vmatpush1.msra.mxu0 0.0
    %337 = vmatprep.subr.mxu0 0.0
    %338 = vmatpush1.msra.mxu0 0.0
    %339 = vmatprep.subr.mxu0 0.0
    %340 = vmatpush1.msra.mxu0 0.0
    %341 = vmatprep.subr.mxu0 0.0
    %342 = vmatpush1.msra.mxu0 0.0
    %343 = vmatprep.subr.mxu0 0.0
    %344 = vmatpush1.msra.mxu0 0.0
    %345 = vmatprep.subr.mxu0 0.0
    %346 = vmatpush1.msra.mxu0 0.0
    %347 = vmatprep.subr.mxu0 0.0
    %348 = vmatpush1.msra.mxu0 0.0
    %349 = vmatprep.subr.mxu0 0.0
    %350 = vmatpush1.msra.mxu0 0.0
    %351 = vmatprep.subr.mxu0 0.0
    %352 = vmatpush1.msra.mxu0 0.0
    %353 = vmatprep.subr.mxu0 0.0
    %354 = vmatpush1.msra.mxu0 0.0
    %355 = vmatprep.subr.mxu0 0.0
    %356 = vmatpush1.msra.mxu0 0.0
    %357 = vmatprep.subr.mxu0 0.0
    %358 = vmatpush1.msra.mxu0 0.0
    %359 = vmatprep.subr.mxu0 0.0
    %360 = vmatpush1.msra.mxu0 0.0
    %361 = vmatprep.subr.mxu0 0.0
    %362 = vmatpush1.msra.mxu0 0.0
    %363 = vmatprep.subr.mxu0 0.0
    %364 = vmatpush1.msra.mxu0 0.0
    %365 = vmatprep.subr.mxu0 0.0
    %366 = vmatpush1.msra.mxu0 0.0
    %367 = vmatprep.subr.mxu0 0.0
    %368 = vmatpush1.msra.mxu0 0.0
    %369 = vmatprep.mubr.f32.mxu0 0.0
    %370 = vmatmul.mubr.f32.gmra.mrb[0].mxu0 %v303
    %v371 = vpop.f32.mrb[0].mxu0
    %v372 = vadd.f32 0.0, %v371
    %v373 = vpop.f32.mrb[0].mxu0
    %374 = vdwg.mxu0
    %v376 = vsel %vm301, %v294, 0
    %378 = vmatprep.subr.mxu0 0.0
    %379 = vmatpush1.msra.mxu0 %v292
    %380 = vmatprep.subr.mxu0 0.0
    %381 = vmatpush1.msra.mxu0 0.0
    %382 = vmatprep.subr.mxu0 0.0
    %383 = vmatpush1.msra.mxu0 0.0
    %384 = vmatprep.subr.mxu0 0.0
    %385 = vmatpush1.msra.mxu0 0.0
    %386 = vmatprep.subr.mxu0 0.0
    %387 = vmatpush1.msra.mxu0 0.0
    %388 = vmatprep.subr.mxu0 0.0
    %389 = vmatpush1.msra.mxu0 0.0
    %390 = vmatprep.subr.mxu0 0.0
    %391 = vmatpush1.msra.mxu0 0.0
    %392 = vmatprep.subr.mxu0 0.0
    %393 = vmatpush1.msra.mxu0 0.0
    %394 = vmatprep.subr.mxu0 0.0
    %395 = vmatpush1.msra.mxu0 0.0
    %396 = vmatprep.subr.mxu0 0.0
    %397 = vmatpush1.msra.mxu0 0.0
    %398 = vmatprep.subr.mxu0 0.0
    %399 = vmatpush1.msra.mxu0 0.0
    %400 = vmatprep.subr.mxu0 0.0
    %401 = vmatpush1.msra.mxu0 0.0
    %402 = vmatprep.subr.mxu0 0.0
    %403 = vmatpush1.msra.mxu0 0.0
    %404 = vmatprep.subr.mxu0 0.0
    %405 = vmatpush1.msra.mxu0 0.0
    %406 = vmatprep.subr.mxu0 0.0
    %407 = vmatpush1.msra.mxu0 0.0
    %408 = vmatprep.subr.mxu0 0.0
    %409 = vmatpush1.msra.mxu0 0.0
    %410 = vmatprep.subr.mxu0 0.0
    %411 = vmatpush1.msra.mxu0 0.0
    %412 = vmatprep.subr.mxu0 0.0
    %413 = vmatpush1.msra.mxu0 0.0
    %414 = vmatprep.subr.mxu0 0.0
    %415 = vmatpush1.msra.mxu0 0.0
    %416 = vmatprep.subr.mxu0 0.0
    %417 = vmatpush1.msra.mxu0 0.0
    %418 = vmatprep.subr.mxu0 0.0
    %419 = vmatpush1.msra.mxu0 0.0
    %420 = vmatprep.subr.mxu0 0.0
    %421 = vmatpush1.msra.mxu0 0.0
    %422 = vmatprep.subr.mxu0 0.0
    %423 = vmatpush1.msra.mxu0 0.0
    %424 = vmatprep.subr.mxu0 0.0
    %425 = vmatpush1.msra.mxu0 0.0
    %426 = vmatprep.subr.mxu0 0.0
    %427 = vmatpush1.msra.mxu0 0.0
    %428 = vmatprep.subr.mxu0 0.0
    %429 = vmatpush1.msra.mxu0 0.0
    %430 = vmatprep.subr.mxu0 0.0
    %431 = vmatpush1.msra.mxu0 0.0
    %432 = vmatprep.subr.mxu0 0.0
    %433 = vmatpush1.msra.mxu0 0.0
    %434 = vmatprep.subr.mxu0 0.0
    %435 = vmatpush1.msra.mxu0 0.0
    %436 = vmatprep.subr.mxu0 0.0
    %437 = vmatpush1.msra.mxu0 0.0
    %438 = vmatprep.subr.mxu0 0.0
    %439 = vmatpush1.msra.mxu0 0.0
    %440 = vmatprep.subr.mxu0 0.0
    %441 = vmatpush1.msra.mxu0 0.0
    %442 = vmatprep.mubr.f32.mxu0 0.0
    %443 = vmatmul.mubr.f32.gmra.mrb[0].mxu0 %v376
    %v444 = vpop.f32.mrb[0].mxu0
    %v445 = vadd.f32 %v372, %v444
    %v446 = vpop.f32.mrb[0].mxu0
    %447 = vdwg.mxu0
    %s448 = scalar_lea.vmem %s1, 40
    %v449 = vld [vmem:[%s448] sm:$0xff]
    %450 = vrot.lane.b32.xlu0 %v292, 126
    %v451 = vpop.permute.xlu0 %450
    %v454 = vsel %vm301, %v449, 0
    %456 = vmatprep.subr.mxu0 0.0
    %457 = vmatpush1.msra.mxu0 %v451
    %458 = vmatprep.subr.mxu0 0.0
    %459 = vmatpush1.msra.mxu0 0.0
    %460 = vmatprep.subr.mxu0 0.0
    %461 = vmatpush1.msra.mxu0 0.0
    %462 = vmatprep.subr.mxu0 0.0
    %463 = vmatpush1.msra.mxu0 0.0
    %464 = vmatprep.subr.mxu0 0.0
    %465 = vmatpush1.msra.mxu0 0.0
    %466 = vmatprep.subr.mxu0 0.0
    %467 = vmatpush1.msra.mxu0 0.0
    %468 = vmatprep.subr.mxu0 0.0
    %469 = vmatpush1.msra.mxu0 0.0
    %470 = vmatprep.subr.mxu0 0.0
    %471 = vmatpush1.msra.mxu0 0.0
    %472 = vmatprep.subr.mxu0 0.0
    %473 = vmatpush1.msra.mxu0 0.0
    %474 = vmatprep.subr.mxu0 0.0
    %475 = vmatpush1.msra.mxu0 0.0
    %476 = vmatprep.subr.mxu0 0.0
    %477 = vmatpush1.msra.mxu0 0.0
    %478 = vmatprep.subr.mxu0 0.0
    %479 = vmatpush1.msra.mxu0 0.0
    %480 = vmatprep.subr.mxu0 0.0
    %481 = vmatpush1.msra.mxu0 0.0
    %482 = vmatprep.subr.mxu0 0.0
    %483 = vmatpush1.msra.mxu0 0.0
    %484 = vmatprep.subr.mxu0 0.0
    %485 = vmatpush1.msra.mxu0 0.0
    %486 = vmatprep.subr.mxu0 0.0
    %487 = vmatpush1.msra.mxu0 0.0
    %488 = vmatprep.subr.mxu0 0.0
    %489 = vmatpush1.msra.mxu0 0.0
    %490 = vmatprep.subr.mxu0 0.0
    %491 = vmatpush1.msra.mxu0 0.0
    %492 = vmatprep.subr.mxu0 0.0
    %493 = vmatpush1.msra.mxu0 0.0
    %494 = vmatprep.subr.mxu0 0.0
    %495 = vmatpush1.msra.mxu0 0.0
    %496 = vmatprep.subr.mxu0 0.0
    %497 = vmatpush1.msra.mxu0 0.0
    %498 = vmatprep.subr.mxu0 0.0
    %499 = vmatpush1.msra.mxu0 0.0
    %500 = vmatprep.subr.mxu0 0.0
    %501 = vmatpush1.msra.mxu0 0.0
    %502 = vmatprep.subr.mxu0 0.0
    %503 = vmatpush1.msra.mxu0 0.0
    %504 = vmatprep.subr.mxu0 0.0
    %505 = vmatpush1.msra.mxu0 0.0
    %506 = vmatprep.subr.mxu0 0.0
    %507 = vmatpush1.msra.mxu0 0.0
    %508 = vmatprep.subr.mxu0 0.0
    %509 = vmatpush1.msra.mxu0 0.0
    %510 = vmatprep.subr.mxu0 0.0
    %511 = vmatpush1.msra.mxu0 0.0
    %512 = vmatprep.subr.mxu0 0.0
    %513 = vmatpush1.msra.mxu0 0.0
    %514 = vmatprep.subr.mxu0 0.0
    %515 = vmatpush1.msra.mxu0 0.0
    %516 = vmatprep.subr.mxu0 0.0
    %517 = vmatpush1.msra.mxu0 0.0
    %518 = vmatprep.subr.mxu0 0.0
    %519 = vmatpush1.msra.mxu0 0.0
    %520 = vmatprep.mubr.f32.mxu0 0.0
    %521 = vmatmul.mubr.f32.gmra.mrb[0].mxu0 %v454
    %v522 = vpop.f32.mrb[0].mxu0
    %v523 = vadd.f32 0.0, %v522
    %v524 = vpop.f32.mrb[0].mxu0
    %525 = vdwg.mxu0
    %v526 = vadd.f32 %v445, %v523
    %s527 = scalar_lea.vmem %s2, 8
    %v528 = vld [vmem:[%s527] sm:$0xff]
    %530 = vset.pattern.permute.xlu0 0
    %531 = vperm.xlu0 %530, %v528
    %v532 = vpop.permute.xlu0 %531
    %v534 = vadd.f32 %v526, %v532
    %v535 = vmax.f32 %v534, 0.0
    %v536 = vld [vmem:[%s3] sm:$0x1]
    %vm537 = vcmp.gt.f32.partialorder %v536, 0.0
    %v538 = vsel %vm537, 1, 0
    %v539 = vlaneseq
    %v540 = vshrl.u32 %v539, 7
    %v541 = vsub.s32 0, %v540
    %v542 = vrot.slane %v538, %v541
    %vm543 = vcmp.eq.s32.totalorder %v542, 1
    %v544 = vsel %vm543, %v535, 0.0
    %546 = vrot.lane.b32.xlu0 %v544, 2
    %v547 = vpop.permute.xlu0 %546
    %549 = vst.msk [vmem:[#allocation2] sm:$0xff] %vm290, %v547
    %v550 = vld [vmem:[#allocation2] sm:$0xff]
    %v551 = vld [vmem:[%s4] sm:$0xff]
    %v552 = vld [vmem:[%s4 + $0x8] sm:$0xff]
    %v553 = vld [vmem:[%s4 + $0x10] sm:$0xff]
    %v554 = vld [vmem:[%s4 + $0x18] sm:$0xff]
    %v555 = vld [vmem:[%s4 + $0x20] sm:$0xf]
    %557 = vrot.lane.b32.xlu0 %v550, 126
    %v558 = vpop.permute.xlu0 %557
    %vm559 = vcmask 293888
    %v560 = vsel %vm559, %v558, 0
    %v563 = vsel %vm41, %v555, 0
    %565 = vmatprep.subr.mxu0 0.0
    %566 = vmatpush1.msra.mxu0 %v551
    %567 = vmatprep.subr.mxu0 0.0
    %568 = vmatpush1.msra.mxu0 %v552
    %569 = vmatprep.subr.mxu0 0.0
    %570 = vmatpush1.msra.mxu0 %v553
    %571 = vmatprep.subr.mxu0 0.0
    %572 = vmatpush1.msra.mxu0 %v554
    %573 = vmatprep.subr.mxu0 0.0
    %574 = vmatpush1.msra.mxu0 %v563
    %575 = vmatprep.subr.mxu0 0.0
    %576 = vmatpush1.msra.mxu0 0.0
    %577 = vmatprep.subr.mxu0 0.0
    %578 = vmatpush1.msra.mxu0 0.0
    %579 = vmatprep.subr.mxu0 0.0
    %580 = vmatpush1.msra.mxu0 0.0
    %581 = vmatprep.subr.mxu0 0.0
    %582 = vmatpush1.msra.mxu0 0.0
    %583 = vmatprep.subr.mxu0 0.0
    %584 = vmatpush1.msra.mxu0 0.0
    %585 = vmatprep.subr.mxu0 0.0
    %586 = vmatpush1.msra.mxu0 0.0
    %587 = vmatprep.subr.mxu0 0.0
    %588 = vmatpush1.msra.mxu0 0.0
    %589 = vmatprep.subr.mxu0 0.0
    %590 = vmatpush1.msra.mxu0 0.0
    %591 = vmatprep.subr.mxu0 0.0
    %592 = vmatpush1.msra.mxu0 0.0
    %593 = vmatprep.subr.mxu0 0.0
    %594 = vmatpush1.msra.mxu0 0.0
    %595 = vmatprep.subr.mxu0 0.0
    %596 = vmatpush1.msra.mxu0 0.0
    %597 = vmatprep.subr.mxu0 0.0
    %598 = vmatpush1.msra.mxu0 0.0
    %599 = vmatprep.subr.mxu0 0.0
    %600 = vmatpush1.msra.mxu0 0.0
    %601 = vmatprep.subr.mxu0 0.0
    %602 = vmatpush1.msra.mxu0 0.0
    %603 = vmatprep.subr.mxu0 0.0
    %604 = vmatpush1.msra.mxu0 0.0
    %605 = vmatprep.subr.mxu0 0.0
    %606 = vmatpush1.msra.mxu0 0.0
    %607 = vmatprep.subr.mxu0 0.0
    %608 = vmatpush1.msra.mxu0 0.0
    %609 = vmatprep.subr.mxu0 0.0
    %610 = vmatpush1.msra.mxu0 0.0
    %611 = vmatprep.subr.mxu0 0.0
    %612 = vmatpush1.msra.mxu0 0.0
    %613 = vmatprep.subr.mxu0 0.0
    %614 = vmatpush1.msra.mxu0 0.0
    %615 = vmatprep.subr.mxu0 0.0
    %616 = vmatpush1.msra.mxu0 0.0
    %617 = vmatprep.subr.mxu0 0.0
    %618 = vmatpush1.msra.mxu0 0.0
    %619 = vmatprep.subr.mxu0 0.0
    %620 = vmatpush1.msra.mxu0 0.0
    %621 = vmatprep.subr.mxu0 0.0
    %622 = vmatpush1.msra.mxu0 0.0
    %623 = vmatprep.subr.mxu0 0.0
    %624 = vmatpush1.msra.mxu0 0.0
    %625 = vmatprep.subr.mxu0 0.0
    %626 = vmatpush1.msra.mxu0 0.0
    %627 = vmatprep.subr.mxu0 0.0
    %628 = vmatpush1.msra.mxu0 0.0
    %629 = vmatprep.mubr.f32.mxu0 0.0
    %630 = vmatmul.mubr.f32.gmra.mrb[0].mxu0 %v560
    %v631 = vpop.f32.mrb[0].mxu0
    %v632 = vadd.f32 0.0, %v631
    %v633 = vpop.f32.mrb[0].mxu0
    %634 = vdwg.mxu0
    %v635 = vld [vmem:[%s5] sm:$0xff]
    %v636 = vld [vmem:[%s5 + $0x8] sm:$0xff]
    %v637 = vld [vmem:[%s5 + $0x10] sm:$0xff]
    %v638 = vld [vmem:[%s5 + $0x18] sm:$0xff]
    %v639 = vld [vmem:[%s5 + $0x20] sm:$0xf]
    %v641 = vsel %vm41, %v639, 0
    %643 = vmatprep.subr.mxu0 0.0
    %644 = vmatpush1.msra.mxu0 %v635
    %645 = vmatprep.subr.mxu0 0.0
    %646 = vmatpush1.msra.mxu0 %v636
    %647 = vmatprep.subr.mxu0 0.0
    %648 = vmatpush1.msra.mxu0 %v637
    %649 = vmatprep.subr.mxu0 0.0
    %650 = vmatpush1.msra.mxu0 %v638
    %651 = vmatprep.subr.mxu0 0.0
    %652 = vmatpush1.msra.mxu0 %v641
    %653 = vmatprep.subr.mxu0 0.0
    %654 = vmatpush1.msra.mxu0 0.0
    %655 = vmatprep.subr.mxu0 0.0
    %656 = vmatpush1.msra.mxu0 0.0
    %657 = vmatprep.subr.mxu0 0.0
    %658 = vmatpush1.msra.mxu0 0.0
    %659 = vmatprep.subr.mxu0 0.0
    %660 = vmatpush1.msra.mxu0 0.0
    %661 = vmatprep.subr.mxu0 0.0
    %662 = vmatpush1.msra.mxu0 0.0
    %663 = vmatprep.subr.mxu0 0.0
    %664 = vmatpush1.msra.mxu0 0.0
    %665 = vmatprep.subr.mxu0 0.0
    %666 = vmatpush1.msra.mxu0 0.0
    %667 = vmatprep.subr.mxu0 0.0
    %668 = vmatpush1.msra.mxu0 0.0
    %669 = vmatprep.subr.mxu0 0.0
    %670 = vmatpush1.msra.mxu0 0.0
    %671 = vmatprep.subr.mxu0 0.0
    %672 = vmatpush1.msra.mxu0 0.0
    %673 = vmatprep.subr.mxu0 0.0
    %674 = vmatpush1.msra.mxu0 0.0
    %675 = vmatprep.subr.mxu0 0.0
    %676 = vmatpush1.msra.mxu0 0.0
    %677 = vmatprep.subr.mxu0 0.0
    %678 = vmatpush1.msra.mxu0 0.0
    %679 = vmatprep.subr.mxu0 0.0
    %680 = vmatpush1.msra.mxu0 0.0
    %681 = vmatprep.subr.mxu0 0.0
    %682 = vmatpush1.msra.mxu0 0.0
    %683 = vmatprep.subr.mxu0 0.0
    %684 = vmatpush1.msra.mxu0 0.0
    %685 = vmatprep.subr.mxu0 0.0
    %686 = vmatpush1.msra.mxu0 0.0
    %687 = vmatprep.subr.mxu0 0.0
    %688 = vmatpush1.msra.mxu0 0.0
    %689 = vmatprep.subr.mxu0 0.0
    %690 = vmatpush1.msra.mxu0 0.0
    %691 = vmatprep.subr.mxu0 0.0
    %692 = vmatpush1.msra.mxu0 0.0
    %693 = vmatprep.subr.mxu0 0.0
    %694 = vmatpush1.msra.mxu0 0.0
    %695 = vmatprep.subr.mxu0 0.0
    %696 = vmatpush1.msra.mxu0 0.0
    %697 = vmatprep.subr.mxu0 0.0
    %698 = vmatpush1.msra.mxu0 0.0
    %699 = vmatprep.subr.mxu0 0.0
    %700 = vmatpush1.msra.mxu0 0.0
    %701 = vmatprep.subr.mxu0 0.0
    %702 = vmatpush1.msra.mxu0 0.0
    %703 = vmatprep.subr.mxu0 0.0
    %704 = vmatpush1.msra.mxu0 0.0
    %705 = vmatprep.subr.mxu0 0.0
    %706 = vmatpush1.msra.mxu0 0.0
    %707 = vmatprep.mubr.f32.mxu0 0.0
    %708 = vmatmul.mubr.f32.gmra.mrb[0].mxu0 %v560
    %v709 = vpop.f32.mrb[0].mxu0
    %v710 = vadd.f32 0.0, %v709
    %v711 = vpop.f32.mrb[0].mxu0
    %712 = vdwg.mxu0
    %v713 = vld [vmem:[%s6] sm:$0xff]
    %s714 = scalar_lea.vmem %s6, 8
    %v715 = vld [vmem:[%s714] sm:$0xff]
    %v717 = vsel %vm301, %v715, 0
    %719 = vmatprep.subr.mxu0 0.0
    %720 = vmatpush1.msra.mxu0 %v710
    %721 = vmatprep.subr.mxu0 0.0
    %722 = vmatpush1.msra.mxu0 0.0
    %723 = vmatprep.subr.mxu0 0.0
    %724 = vmatpush1.msra.mxu0 0.0
    %725 = vmatprep.subr.mxu0 0.0
    %726 = vmatpush1.msra.mxu0 0.0
    %727 = vmatprep.subr.mxu0 0.0
    %728 = vmatpush1.msra.mxu0 0.0
    %729 = vmatprep.subr.mxu0 0.0
    %730 = vmatpush1.msra.mxu0 0.0
    %731 = vmatprep.subr.mxu0 0.0
    %732 = vmatpush1.msra.mxu0 0.0
    %733 = vmatprep.subr.mxu0 0.0
    %734 = vmatpush1.msra.mxu0 0.0
    %735 = vmatprep.subr.mxu0 0.0
    %736 = vmatpush1.msra.mxu0 0.0
    %737 = vmatprep.subr.mxu0 0.0
    %738 = vmatpush1.msra.mxu0 0.0
    %739 = vmatprep.subr.mxu0 0.0
    %740 = vmatpush1.msra.mxu0 0.0
    %741 = vmatprep.subr.mxu0 0.0
    %742 = vmatpush1.msra.mxu0 0.0
    %743 = vmatprep.subr.mxu0 0.0
    %744 = vmatpush1.msra.mxu0 0.0
    %745 = vmatprep.subr.mxu0 0.0
    %746 = vmatpush1.msra.mxu0 0.0
    %747 = vmatprep.subr.mxu0 0.0
    %748 = vmatpush1.msra.mxu0 0.0
    %749 = vmatprep.subr.mxu0 0.0
    %750 = vmatpush1.msra.mxu0 0.0
    %751 = vmatprep.subr.mxu0 0.0
    %752 = vmatpush1.msra.mxu0 0.0
    %753 = vmatprep.subr.mxu0 0.0
    %754 = vmatpush1.msra.mxu0 0.0
    %755 = vmatprep.subr.mxu0 0.0
    %756 = vmatpush1.msra.mxu0 0.0
    %757 = vmatprep.subr.mxu0 0.0
    %758 = vmatpush1.msra.mxu0 0.0
    %759 = vmatprep.subr.mxu0 0.0
    %760 = vmatpush1.msra.mxu0 0.0
    %761 = vmatprep.subr.mxu0 0.0
    %762 = vmatpush1.msra.mxu0 0.0
    %763 = vmatprep.subr.mxu0 0.0
    %764 = vmatpush1.msra.mxu0 0.0
    %765 = vmatprep.subr.mxu0 0.0
    %766 = vmatpush1.msra.mxu0 0.0
    %767 = vmatprep.subr.mxu0 0.0
    %768 = vmatpush1.msra.mxu0 0.0
    %769 = vmatprep.subr.mxu0 0.0
    %770 = vmatpush1.msra.mxu0 0.0
    %771 = vmatprep.subr.mxu0 0.0
    %772 = vmatpush1.msra.mxu0 0.0
    %773 = vmatprep.subr.mxu0 0.0
    %774 = vmatpush1.msra.mxu0 0.0
    %775 = vmatprep.subr.mxu0 0.0
    %776 = vmatpush1.msra.mxu0 0.0
    %777 = vmatprep.subr.mxu0 0.0
    %778 = vmatpush1.msra.mxu0 0.0
    %779 = vmatprep.subr.mxu0 0.0
    %780 = vmatpush1.msra.mxu0 0.0
    %781 = vmatprep.subr.mxu0 0.0
    %782 = vmatpush1.msra.mxu0 0.0
    %783 = vmatprep.mubr.f32.mxu0 0.0
    %784 = vmatmul.mubr.f32.gmra.mrb[0].mxu0 %v717
    %v785 = vpop.f32.mrb[0].mxu0
    %v786 = vadd.f32 0.0, %v785
    %v787 = vpop.f32.mrb[0].mxu0
    %788 = vdwg.mxu0
    %v790 = vsel %vm301, %v713, 0
    %792 = vmatprep.subr.mxu0 0.0
    %793 = vmatpush1.msra.mxu0 %v632
    %794 = vmatprep.subr.mxu0 0.0
    %795 = vmatpush1.msra.mxu0 0.0
    %796 = vmatprep.subr.mxu0 0.0
    %797 = vmatpush1.msra.mxu0 0.0
    %798 = vmatprep.subr.mxu0 0.0
    %799 = vmatpush1.msra.mxu0 0.0
    %800 = vmatprep.subr.mxu0 0.0
    %801 = vmatpush1.msra.mxu0 0.0
    %802 = vmatprep.subr.mxu0 0.0
    %803 = vmatpush1.msra.mxu0 0.0
    %804 = vmatprep.subr.mxu0 0.0
    %805 = vmatpush1.msra.mxu0 0.0
    %806 = vmatprep.subr.mxu0 0.0
    %807 = vmatpush1.msra.mxu0 0.0
    %808 = vmatprep.subr.mxu0 0.0
    %809 = vmatpush1.msra.mxu0 0.0
    %810 = vmatprep.subr.mxu0 0.0
    %811 = vmatpush1.msra.mxu0 0.0
    %812 = vmatprep.subr.mxu0 0.0
    %813 = vmatpush1.msra.mxu0 0.0
    %814 = vmatprep.subr.mxu0 0.0
    %815 = vmatpush1.msra.mxu0 0.0
    %816 = vmatprep.subr.mxu0 0.0
    %817 = vmatpush1.msra.mxu0 0.0
    %818 = vmatprep.subr.mxu0 0.0
    %819 = vmatpush1.msra.mxu0 0.0
    %820 = vmatprep.subr.mxu0 0.0
    %821 = vmatpush1.msra.mxu0 0.0
    %822 = vmatprep.subr.mxu0 0.0
    %823 = vmatpush1.msra.mxu0 0.0
    %824 = vmatprep.subr.mxu0 0.0
    %825 = vmatpush1.msra.mxu0 0.0
    %826 = vmatprep.subr.mxu0 0.0
    %827 = vmatpush1.msra.mxu0 0.0
    %828 = vmatprep.subr.mxu0 0.0
    %829 = vmatpush1.msra.mxu0 0.0
    %830 = vmatprep.subr.mxu0 0.0
    %831 = vmatpush1.msra.mxu0 0.0
    %832 = vmatprep.subr.mxu0 0.0
    %833 = vmatpush1.msra.mxu0 0.0
    %834 = vmatprep.subr.mxu0 0.0
    %835 = vmatpush1.msra.mxu0 0.0
    %836 = vmatprep.subr.mxu0 0.0
    %837 = vmatpush1.msra.mxu0 0.0
    %838 = vmatprep.subr.mxu0 0.0
    %839 = vmatpush1.msra.mxu0 0.0
    %840 = vmatprep.subr.mxu0 0.0
    %841 = vmatpush1.msra.mxu0 0.0
    %842 = vmatprep.subr.mxu0 0.0
    %843 = vmatpush1.msra.mxu0 0.0
    %844 = vmatprep.subr.mxu0 0.0
    %845 = vmatpush1.msra.mxu0 0.0
    %846 = vmatprep.subr.mxu0 0.0
    %847 = vmatpush1.msra.mxu0 0.0
    %848 = vmatprep.subr.mxu0 0.0
    %849 = vmatpush1.msra.mxu0 0.0
    %850 = vmatprep.subr.mxu0 0.0
    %851 = vmatpush1.msra.mxu0 0.0
    %852 = vmatprep.subr.mxu0 0.0
    %853 = vmatpush1.msra.mxu0 0.0
    %854 = vmatprep.subr.mxu0 0.0
    %855 = vmatpush1.msra.mxu0 0.0
    %856 = vmatprep.mubr.f32.mxu0 0.0
    %857 = vmatmul.mubr.f32.gmra.mrb[0].mxu0 %v790
    %v858 = vpop.f32.mrb[0].mxu0
    %v859 = vadd.f32 %v786, %v858
    %v860 = vpop.f32.mrb[0].mxu0
    %861 = vdwg.mxu0
    %v862 = vld [vmem:[%s7] sm:$0xff]
    %864 = vset.pattern.permute.xlu0 0
    %865 = vperm.xlu0 %864, %v862
    %v866 = vpop.permute.xlu0 %865
    %v868 = vadd.f32 %v859, %v866
    %v869 = vmax.f32 %v868, 0.0
    %vm870 = vcmask 130048
    %871 = vst.msk [vmem:[#allocation3] sm:$0xff] %vm870, %v869
    // Predicated region
    $region34: #{tpu_custom_call.1} parent=1 // pred_check
      _
    $region35: #{tpu_custom_call.1} parent=1 // pred_check_branch
      %873 = sbr.rel (0) target = $region37
    $region36: #{tpu_custom_call.1} parent=1 // pred_region
      %s875 = ssub.s32 128, 128
      %876 = vsyncadd [#allocation4], %s875
      %s878 = sshll.u32 [#allocation3], 4
      %s879 = int_to_ptr.vmem [resolvable:$true] %s878
      %881 = dma.vmem_to_hbm [thread:$0]  %s879, 128, %s8, [#allocation4]
    $region37: #{tpu_custom_call.1} parent=1 // pred_fallthru
      _
    // Predicated region
    $region38: #{tpu_custom_call.1} parent=1 // pred_check
      _
    $region39: #{tpu_custom_call.1} parent=1 // pred_check_branch
      %883 = sbr.rel (0) target = $region41
    $region40: #{tpu_custom_call.1} parent=1 // pred_region
      %884 = dma.done [#allocation4], 128
    $region41: #{tpu_custom_call.1} parent=1 // pred_fallthru
      _
    %885 = vsyncpa [#allocation4], 1

</llo_original>
